<compile_context>
chip_gen: v7x
topology: tpu7x:2x2x1
jax: 0.10.0
libtpu: 0.0.40
codegen_flags: <defaults>
</compile_context>

<pallas_src>
import functools

import jax
import jax.numpy as jnp
from jax.experimental import pallas as pl
from jax.experimental.pallas import tpu as pltpu


_FAST_PATH_ELEMS = 64 * 1024        # below this, two-kernel launch overhead dominates
_MAX_ROW_TILE = 512                 # 512 rows x 1024 lanes = 2 MiB f32 per input block
_SUB_ROWS = 64                      # streaming sub-slab height (multiple of 8)


def _choose_layout(n_total):
    """Pick (lane, rows, row_tile, sub) for a lane-dense 2-D slab, or None."""
    lane = None
    for cand in (1024, 512, 256, 128):
        if n_total % cand == 0:
            lane = cand
            break
    if lane is None:
        return None                                   # awkward size -> jnp fallback
    rows = n_total // lane
    row_tile = min(_MAX_ROW_TILE, -(-rows // 8) * 8)  # multiple of 8, <= 512
    sub = _SUB_ROWS if row_tile % _SUB_ROWS == 0 else row_tile
    return lane, rows, row_tile, sub


def _content_loss_kernel(w_ref, x_ref, t_ref, acc_ref, *,
                         lane, row_tile, sub, rows_valid, needs_mask):
    # w_ref: SMEM (1,) f32 scalar prefetch.  x/t: (row_tile, lane) native dtype.
    # acc_ref: (8, lane) f32, resident accumulator for this shard.
    @pl.when(pl.program_id(1) == 0)
    def _init():
        acc_ref[...] = jnp.zeros_like(acc_ref)

    w = w_ref[0]
    if needs_mask:
        tile_idx = pl.program_id(0) * pl.num_programs(1) + pl.program_id(1)
        tile_row0 = tile_idx * row_tile

    acc = jnp.zeros((8, lane), jnp.float32)
    for s in range(row_tile // sub):                  # streaming sub-slabs (<= 8 typ.)
        xs = x_ref[s * sub:(s + 1) * sub, :].astype(jnp.float32)
        ts = t_ref[s * sub:(s + 1) * sub, :].astype(jnp.float32)
        d = xs * w - ts
        if needs_mask:
            ridx = tile_row0 + s * sub + jax.lax.broadcasted_iota(
                jnp.int32, (sub, 1), 0)
            d = jnp.where(ridx < rows_valid, d, 0.0)  # zero OOB tail rows
        d2 = d * d
        for g in range(sub // 8):                     # fold sublane groups, pure VPU adds
            acc = acc + d2[g * 8:(g + 1) * 8, :]
    acc_ref[...] += acc


def content_loss_forward(x, target, weight):
    """Pallas equivalent of ContentLoss.forward.

    Returns (output, loss): `output` is the functional clone of `x` (the input
    itself), loss = mean((x * weight - target)**2) in f32.  `target` must
    already be pre-scaled by `weight`, as in the PyTorch module.
    """
    assert x.shape == target.shape
    n_total = int(x.size)

    layout = _choose_layout(n_total) if n_total >= _FAST_PATH_ELEMS else None
    if layout is None:
        # Small-input / awkward-size fast path: one fused XLA elementwise+reduce.
        w32 = jnp.float32(weight)
        loss = jnp.mean((x.astype(jnp.float32) * w32
                         - target.astype(jnp.float32)) ** 2)
        return x, loss

    lane, rows, row_tile, sub = layout
    num_tiles = -(-rows // row_tile)
    num_shards = 2 if (num_tiles >= 2 and num_tiles % 2 == 0) else 1
    tiles_per_shard = num_tiles // num_shards
    needs_mask = (rows % row_tile) != 0

    x2d = x.reshape(rows, lane)          # contiguous reshape: no data movement
    t2d = target.reshape(rows, lane)
    w = jnp.asarray(weight, jnp.float32).reshape(1)

    kernel = functools.partial(
        _content_loss_kernel, lane=lane, row_tile=row_tile, sub=sub,
        rows_valid=rows, needs_mask=needs_mask)

    bytes_accessed = n_total * (x2d.dtype.itemsize + t2d.dtype.itemsize) \
        + num_shards * 8 * lane * 4
    cost = pl.CostEstimate(flops=4 * n_total, transcendentals=0,
                           bytes_accessed=bytes_accessed)

    partials = pl.pallas_call(
        kernel,
        out_shape=jax.ShapeDtypeStruct((num_shards * 8, lane), jnp.float32),
        grid_spec=pltpu.PrefetchScalarGridSpec(
            num_scalar_prefetch=1,
            grid=(num_shards, tiles_per_shard),
            in_specs=[
                pl.BlockSpec((row_tile, lane),
                             lambda i, j, w_ref: (i * tiles_per_shard + j, 0)),
                pl.BlockSpec((row_tile, lane),
                             lambda i, j, w_ref: (i * tiles_per_shard + j, 0)),
            ],
            out_specs=pl.BlockSpec((8, lane), lambda i, j, w_ref: (i, 0)),
        ),
        compiler_params=pltpu.CompilerParams(
            dimension_semantics=(pltpu.PARALLEL, pltpu.ARBITRARY),
            vmem_limit_bytes=32 * 1024 * 1024,
        ),
        cost_estimate=cost,
    )(w, x2d, t2d)

    loss = jnp.sum(partials) * (1.0 / float(n_total))
    # input.clone() is an identity at the functional level (JAX arrays are
    # immutable): return x directly and skip the redundant HBM write pass.
    return x, loss


if __name__ == "__main__":
    key = jax.random.PRNGKey(0)
    weight = 0.5

    cases = [
        ((2, 4, 16, 16), jnp.float32),     # tiny  -> jnp fast path
        ((4, 8, 64, 64), jnp.float32),     # single-tile Pallas path
        ((2, 8, 64, 128), jnp.bfloat16),   # bf16 Pallas path
        ((4, 16, 96, 128), jnp.float32),   # multi-tile + tail mask + 2-shard path
    ]

    k = key
    for shape, dtype in cases:
        k, k1, k2 = jax.random.split(k, 3)
        x = jax.random.normal(k1, shape, dtype=jnp.float32).astype(dtype)
        raw_target = jax.random.normal(k2, shape, dtype=jnp.float32).astype(dtype)
        # The module stores self.target = target.detach() * weight at construction.
        target = (raw_target.astype(jnp.float32) * weight).astype(dtype)

        out, loss = content_loss_forward(x, target, weight)
        out = jax.block_until_ready(out)
        loss = jax.block_until_ready(loss)

        ref_loss = jnp.mean((x.astype(jnp.float32) * weight
                             - target.astype(jnp.float32)) ** 2)
        assert jnp.allclose(loss, ref_loss, rtol=1e-4, atol=1e-6), (shape, loss, ref_loss)
        assert (out is x) or bool(jnp.array_equal(out, x)), shape

    print("KERNEL_OK")
</pallas_src>

<mosaic_0001>
module attributes {stable_mosaic.version = 11 : i64} {
  func.func @_content_loss_kernel(%arg0: i32, %arg1: i32, %arg2: memref<1xf32, #tpu.memory_space<smem>>, %arg3: memref<128x1024xf32, #tpu.memory_space<vmem>>, %arg4: memref<128x1024xf32, #tpu.memory_space<vmem>>, %arg5: memref<8x1024xf32, #tpu.memory_space<vmem>>) attributes {dimension_semantics = [#tpu.dimension_semantics<parallel>, #tpu.dimension_semantics<arbitrary>], iteration_bounds = array<i64: 1, 1>, scalar_prefetch = 1 : i64, scratch_operands = 0 : i64, tpu.core_type = #tpu.core_type<tc>, window_params = [{transform_indices = @transform_0, window_bounds = array<i64: 128, 1024>}, {transform_indices = @transform_1, window_bounds = array<i64: 128, 1024>}, {transform_indices = @transform_2, window_bounds = array<i64: 8, 1024>}]} {
    %c0_i32 = arith.constant 0 : i32
    %0 = arith.cmpi eq, %arg1, %c0_i32 : i32
    %1 = arith.extui %0 : i1 to i32
    %c0_i32_0 = arith.constant 0 : i32
    %2 = arith.cmpi ne, %1, %c0_i32_0 : i32
    scf.if %2 {
      %cst_12 = arith.constant 0.000000e+00 : f32
      %52 = vector.broadcast %cst_12 : f32 to vector<8x1024xf32>
      %c0_13 = arith.constant 0 : index
      %c0_14 = arith.constant 0 : index
      %53 = vector.load %arg5[%c0_13, %c0_14] : memref<8x1024xf32, #tpu.memory_space<vmem>>, vector<8x1024xf32>
      tpu.vector_store %arg5[%c0_13, %c0_14], %52 {strides = array<i32>} : memref<8x1024xf32, #tpu.memory_space<vmem>>, vector<8x1024xf32>,
    } else {
    }
    %c0 = arith.constant 0 : index
    %3 = memref.load %arg2[%c0] : memref<1xf32, #tpu.memory_space<smem>>
    %cst = arith.constant 0.000000e+00 : f32
    %4 = vector.broadcast %cst : f32 to vector<8x1024xf32>
    %c0_1 = arith.constant 0 : index
    %c0_2 = arith.constant 0 : index
    %5 = vector.load %arg3[%c0_1, %c0_2] : memref<128x1024xf32, #tpu.memory_space<vmem>>, vector<64x1024xf32>
    %c0_3 = arith.constant 0 : index
    %c0_4 = arith.constant 0 : index
    %6 = vector.load %arg4[%c0_3, %c0_4] : memref<128x1024xf32, #tpu.memory_space<vmem>>, vector<64x1024xf32>
    %7 = vector.broadcast %3 : f32 to vector<64x1024xf32>
    %8 = arith.mulf %5, %7 : vector<64x1024xf32>
    %9 = arith.subf %8, %6 : vector<64x1024xf32>
    %10 = arith.mulf %9, %9 : vector<64x1024xf32>
    %11 = vector.extract_strided_slice %10 {offsets = [0, 0], sizes = [8, 1024], strides = [1, 1]} : vector<64x1024xf32> to vector<8x1024xf32>
    %12 = arith.addf %4, %11 : vector<8x1024xf32>
    %13 = vector.extract_strided_slice %10 {offsets = [8, 0], sizes = [8, 1024], strides = [1, 1]} : vector<64x1024xf32> to vector<8x1024xf32>
    %14 = arith.addf %12, %13 : vector<8x1024xf32>
    %15 = vector.extract_strided_slice %10 {offsets = [16, 0], sizes = [8, 1024], strides = [1, 1]} : vector<64x1024xf32> to vector<8x1024xf32>
    %16 = arith.addf %14, %15 : vector<8x1024xf32>
    %17 = vector.extract_strided_slice %10 {offsets = [24, 0], sizes = [8, 1024], strides = [1, 1]} : vector<64x1024xf32> to vector<8x1024xf32>
    %18 = arith.addf %16, %17 : vector<8x1024xf32>
    %19 = vector.extract_strided_slice %10 {offsets = [32, 0], sizes = [8, 1024], strides = [1, 1]} : vector<64x1024xf32> to vector<8x1024xf32>
    %20 = arith.addf %18, %19 : vector<8x1024xf32>
    %21 = vector.extract_strided_slice %10 {offsets = [40, 0], sizes = [8, 1024], strides = [1, 1]} : vector<64x1024xf32> to vector<8x1024xf32>
    %22 = arith.addf %20, %21 : vector<8x1024xf32>
    %23 = vector.extract_strided_slice %10 {offsets = [48, 0], sizes = [8, 1024], strides = [1, 1]} : vector<64x1024xf32> to vector<8x1024xf32>
    %24 = arith.addf %22, %23 : vector<8x1024xf32>
    %25 = vector.extract_strided_slice %10 {offsets = [56, 0], sizes = [8, 1024], strides = [1, 1]} : vector<64x1024xf32> to vector<8x1024xf32>
    %26 = arith.addf %24, %25 : vector<8x1024xf32>
    %c64 = arith.constant 64 : index
    %c0_5 = arith.constant 0 : index
    %27 = vector.load %arg3[%c64, %c0_5] : memref<128x1024xf32, #tpu.memory_space<vmem>>, vector<64x1024xf32>
    %c64_6 = arith.constant 64 : index
    %c0_7 = arith.constant 0 : index
    %28 = vector.load %arg4[%c64_6, %c0_7] : memref<128x1024xf32, #tpu.memory_space<vmem>>, vector<64x1024xf32>
    %29 = vector.broadcast %3 : f32 to vector<64x1024xf32>
    %30 = arith.mulf %27, %29 : vector<64x1024xf32>
    %31 = arith.subf %30, %28 : vector<64x1024xf32>
    %32 = arith.mulf %31, %31 : vector<64x1024xf32>
    %33 = vector.extract_strided_slice %32 {offsets = [0, 0], sizes = [8, 1024], strides = [1, 1]} : vector<64x1024xf32> to vector<8x1024xf32>
    %34 = arith.addf %26, %33 : vector<8x1024xf32>
    %35 = vector.extract_strided_slice %32 {offsets = [8, 0], sizes = [8, 1024], strides = [1, 1]} : vector<64x1024xf32> to vector<8x1024xf32>
    %36 = arith.addf %34, %35 : vector<8x1024xf32>
    %37 = vector.extract_strided_slice %32 {offsets = [16, 0], sizes = [8, 1024], strides = [1, 1]} : vector<64x1024xf32> to vector<8x1024xf32>
    %38 = arith.addf %36, %37 : vector<8x1024xf32>
    %39 = vector.extract_strided_slice %32 {offsets = [24, 0], sizes = [8, 1024], strides = [1, 1]} : vector<64x1024xf32> to vector<8x1024xf32>
    %40 = arith.addf %38, %39 : vector<8x1024xf32>
    %41 = vector.extract_strided_slice %32 {offsets = [32, 0], sizes = [8, 1024], strides = [1, 1]} : vector<64x1024xf32> to vector<8x1024xf32>
    %42 = arith.addf %40, %41 : vector<8x1024xf32>
    %43 = vector.extract_strided_slice %32 {offsets = [40, 0], sizes = [8, 1024], strides = [1, 1]} : vector<64x1024xf32> to vector<8x1024xf32>
    %44 = arith.addf %42, %43 : vector<8x1024xf32>
    %45 = vector.extract_strided_slice %32 {offsets = [48, 0], sizes = [8, 1024], strides = [1, 1]} : vector<64x1024xf32> to vector<8x1024xf32>
    %46 = arith.addf %44, %45 : vector<8x1024xf32>
    %47 = vector.extract_strided_slice %32 {offsets = [56, 0], sizes = [8, 1024], strides = [1, 1]} : vector<64x1024xf32> to vector<8x1024xf32>
    %48 = arith.addf %46, %47 : vector<8x1024xf32>
    %c0_8 = arith.constant 0 : index
    %c0_9 = arith.constant 0 : index
    %49 = vector.load %arg5[%c0_8, %c0_9] : memref<8x1024xf32, #tpu.memory_space<vmem>>, vector<8x1024xf32>
    %50 = arith.addf %49, %48 : vector<8x1024xf32>
    %c0_10 = arith.constant 0 : index
    %c0_11 = arith.constant 0 : index
    %51 = vector.load %arg5[%c0_10, %c0_11] : memref<8x1024xf32, #tpu.memory_space<vmem>>, vector<8x1024xf32>
    tpu.vector_store %arg5[%c0_10, %c0_11], %50 {strides = array<i32>} : memref<8x1024xf32, #tpu.memory_space<vmem>>, vector<8x1024xf32>,
    return
  }
  func.func @transform_0(%arg0: i32, %arg1: i32, %arg2: memref<1xf32, #tpu.memory_space<smem>>) -> (i32, i32) {
    %c1_i32 = arith.constant 1 : i32
    %0 = arith.muli %arg0, %c1_i32 : i32
    %1 = arith.addi %0, %arg1 : i32
    %c0_i32 = arith.constant 0 : i32
    %c0_i32_0 = arith.constant 0 : i32
    return %1, %c0_i32 : i32, i32
  }
  func.func @transform_1(%arg0: i32, %arg1: i32, %arg2: memref<1xf32, #tpu.memory_space<smem>>) -> (i32, i32) {
    %c1_i32 = arith.constant 1 : i32
    %0 = arith.muli %arg0, %c1_i32 : i32
    %1 = arith.addi %0, %arg1 : i32
    %c0_i32 = arith.constant 0 : i32
    %c0_i32_0 = arith.constant 0 : i32
    return %1, %c0_i32 : i32, i32
  }
  func.func @transform_2(%arg0: i32, %arg1: i32, %arg2: memref<1xf32, #tpu.memory_space<smem>>) -> (i32, i32) {
    %c0_i32 = arith.constant 0 : i32
    %c0_i32_0 = arith.constant 0 : i32
    return %arg0, %c0_i32 : i32, i32
  }
}

</mosaic_0001>

<llo_original>
// kernel: tpu_custom_call.1
$region0: #{tpu_custom_call.1}
  #allocation0 [shape = 'u32[]', space=smem, size = 0x4, offset = 0x4, fixed_abs, tag = 'smem constant byte address 0x4 - core index']
  #allocation1 [shape = 'u32[144,128]{1,0:T(1,128)}', space=vmem, size = 0x12000, scoped, tag = 'internal scratch']
  #allocation2 [shape = 's32[1]{0}', space=sflag, size = 0x4, scoped, tag = 'scoped memory for tpu_custom_call.1']
  #allocation3 [shape = 'f32[1]{0:T(128)S(6)}', space=smem, size = 0x200, scoped, tag = 'prefetched SMEM operand 0']
  %s0 = inlined_call_operand.<no memory space> [shape: f32[1], index: 0, kind: input, shape index: {}]
  %s1 = inlined_call_operand.hbm [shape: f32[128,1024], index: 1, kind: input, shape index: {}]
  %s2 = inlined_call_operand.hbm [shape: f32[128,1024], index: 2, kind: input, shape index: {}]
  %s3 = inlined_call_operand.hbm [shape: f32[8,1024], index: 3, kind: output, shape index: {}]
  %s4 = sld [smem:[#allocation0]]
  $region30: #{tpu_custom_call.1} parent=0
    _
  %s6 = ssub.s32 1, %s4
  %s7 = scalar_select 0, %s6, %s4
  %8 = sst [smem:[#allocation3]] %s0
  $region1: #{tpu_custom_call.1} parent=0
    #allocation4 [shape = 'u8[524288]{0}', space=vmem, size = 0x80000, scoped, tag = 'input window, operand 1, single buffered']
    #allocation5 [shape = 's32[1]{0}', space=sflag, size = 0x4, scoped, tag = 'scoped memory for tpu_custom_call.1']
    #allocation6 [shape = 's32[1]{0}', space=sflag, size = 0x4, scoped, tag = 'scoped memory for tpu_custom_call.1']
    #allocation7 [shape = 'u8[524288]{0}', space=vmem, size = 0x80000, scoped, tag = 'input window, operand 2, single buffered']
    #allocation8 [shape = 's32[1]{0}', space=sflag, size = 0x4, scoped, tag = 'scoped memory for tpu_custom_call.1']
    #allocation9 [shape = 'u8[32768]{0}', space=vmem, size = 0x8000, scoped, tag = 'output window, operand 0, single buffered']
    %9 = vsyncpa [#allocation5], 0
    %10 = vsyncpa [#allocation8], 0
    %11 = vsyncpa [#allocation6], 0
    // Predicated region
    $region2: #{tpu_custom_call.1} parent=1 // pred_check
      _
    $region3: #{tpu_custom_call.1} parent=1 // pred_check_branch
      %13 = sbr.rel (0) target = $region5
    $region4: #{tpu_custom_call.1} parent=1 // pred_region
      %s14 = sadd.s32 0, 0
      %s15 = smul.u32 16, %s14
      %s17 = ssub.s32 16384, 16384
      %18 = vsyncadd [#allocation5], %s17
      %s19 = smul.addr %s15, 8
      %s20 = smul.addr %s19, 128
      %s21 = scalar_lea.hbm %s1, %s20
      %s22 = sshll.u32 [#allocation4], 4
      %s23 = int_to_ptr.vmem [resolvable:$true] %s22
      %28 = dma.hbm_to_vmem [thread:$0]  %s21, 16384, %s23, [#allocation5], 1024, 1024, 64
    $region5: #{tpu_custom_call.1} parent=1 // pred_fallthru
      _
    // Predicated region
    $region6: #{tpu_custom_call.1} parent=1 // pred_check
      _
    $region7: #{tpu_custom_call.1} parent=1 // pred_check_branch
      %30 = sbr.rel (0) target = $region9
    $region8: #{tpu_custom_call.1} parent=1 // pred_region
      %s31 = sadd.s32 0, 0
      %s32 = smul.u32 16, %s31
      %s34 = ssub.s32 16384, 16384
      %35 = vsyncadd [#allocation8], %s34
      %s36 = smul.addr %s32, 8
      %s37 = smul.addr %s36, 128
      %s38 = scalar_lea.hbm %s2, %s37
      %s39 = sshll.u32 [#allocation7], 4
      %s40 = int_to_ptr.vmem [resolvable:$true] %s39
      %45 = dma.hbm_to_vmem [thread:$0]  %s38, 16384, %s40, [#allocation8], 1024, 1024, 64
    $region9: #{tpu_custom_call.1} parent=1 // pred_fallthru
      _
    // Predicated region
    $region10: #{tpu_custom_call.1} parent=1 // pred_check
      _
    $region11: #{tpu_custom_call.1} parent=1 // pred_check_branch
      %47 = sbr.rel (0) target = $region13
    $region12: #{tpu_custom_call.1} parent=1 // pred_region
      %48 = dma.done [#allocation5], 16384
    $region13: #{tpu_custom_call.1} parent=1 // pred_fallthru
      _
    // Predicated region
    $region14: #{tpu_custom_call.1} parent=1 // pred_check
      _
    $region15: #{tpu_custom_call.1} parent=1 // pred_check_branch
      %50 = sbr.rel (0) target = $region17
    $region16: #{tpu_custom_call.1} parent=1 // pred_region
      %51 = dma.done [#allocation8], 16384
    $region17: #{tpu_custom_call.1} parent=1 // pred_fallthru
      _
    %s52 = sadd.s32 0, 0
    %s53 = smul.u32 16, %s52
    %s54 = sadd.s32 0, 0
    %s55 = smul.u32 16, %s54
    %p56 = scmp.eq.s32.totalorder 0, 0
    // Predicated region
    $region18: #{tpu_custom_call.1} parent=1 // pred_check
      %p57 = pneg %p56
    $region19: #{tpu_custom_call.1} parent=1 // pred_check_branch
      %59 = sbr.rel (%p57) target = $region21
    $region20: #{tpu_custom_call.1} parent=1 // pred_region
      %60 = vst [vmem:[#allocation9] sm:$0xff] 0.0
      %61 = vst [vmem:[#allocation9 + $0x8] sm:$0xff] 0.0
      %62 = vst [vmem:[#allocation9 + $0x10] sm:$0xff] 0.0
      %63 = vst [vmem:[#allocation9 + $0x18] sm:$0xff] 0.0
      %64 = vst [vmem:[#allocation9 + $0x20] sm:$0xff] 0.0
      %65 = vst [vmem:[#allocation9 + $0x28] sm:$0xff] 0.0
      %66 = vst [vmem:[#allocation9 + $0x30] sm:$0xff] 0.0
      %67 = vst [vmem:[#allocation9 + $0x38] sm:$0xff] 0.0
    $region21: #{tpu_custom_call.1} parent=1 // pred_fallthru
      _
    %s68 = sld [smem:[#allocation3]]
    %v69 = vld [vmem:[#allocation4] sm:$0xff]
    %v70 = vld [vmem:[#allocation4 + $0x8] sm:$0xff]
    %v71 = vld [vmem:[#allocation4 + $0x10] sm:$0xff]
    %v72 = vld [vmem:[#allocation4 + $0x18] sm:$0xff]
    %v73 = vld [vmem:[#allocation4 + $0x20] sm:$0xff]
    %v74 = vld [vmem:[#allocation4 + $0x28] sm:$0xff]
    %v75 = vld [vmem:[#allocation4 + $0x30] sm:$0xff]
    %v76 = vld [vmem:[#allocation4 + $0x38] sm:$0xff]
    %v77 = vld [vmem:[#allocation4 + $0x40] sm:$0xff]
    %v78 = vld [vmem:[#allocation4 + $0x48] sm:$0xff]
    %v79 = vld [vmem:[#allocation4 + $0x50] sm:$0xff]
    %v80 = vld [vmem:[#allocation4 + $0x58] sm:$0xff]
    %v81 = vld [vmem:[#allocation4 + $0x60] sm:$0xff]
    %v82 = vld [vmem:[#allocation4 + $0x68] sm:$0xff]
    %v83 = vld [vmem:[#allocation4 + $0x70] sm:$0xff]
    %v84 = vld [vmem:[#allocation4 + $0x78] sm:$0xff]
    %v85 = vld [vmem:[#allocation4 + $0x80] sm:$0xff]
    %v86 = vld [vmem:[#allocation4 + $0x88] sm:$0xff]
    %v87 = vld [vmem:[#allocation4 + $0x90] sm:$0xff]
    %v88 = vld [vmem:[#allocation4 + $0x98] sm:$0xff]
    %v89 = vld [vmem:[#allocation4 + $0xa0] sm:$0xff]
    %v90 = vld [vmem:[#allocation4 + $0xa8] sm:$0xff]
    %v91 = vld [vmem:[#allocation4 + $0xb0] sm:$0xff]
    %v92 = vld [vmem:[#allocation4 + $0xb8] sm:$0xff]
    %v93 = vld [vmem:[#allocation4 + $0xc0] sm:$0xff]
    %v94 = vld [vmem:[#allocation4 + $0xc8] sm:$0xff]
    %v95 = vld [vmem:[#allocation4 + $0xd0] sm:$0xff]
    %v96 = vld [vmem:[#allocation4 + $0xd8] sm:$0xff]
    %v97 = vld [vmem:[#allocation4 + $0xe0] sm:$0xff]
    %v98 = vld [vmem:[#allocation4 + $0xe8] sm:$0xff]
    %v99 = vld [vmem:[#allocation4 + $0xf0] sm:$0xff]
    %v100 = vld [vmem:[#allocation4 + $0xf8] sm:$0xff]
    %v101 = vld [vmem:[#allocation4 + $0x100] sm:$0xff]
    %v102 = vld [vmem:[#allocation4 + $0x108] sm:$0xff]
    %v103 = vld [vmem:[#allocation4 + $0x110] sm:$0xff]
    %v104 = vld [vmem:[#allocation4 + $0x118] sm:$0xff]
    %v105 = vld [vmem:[#allocation4 + $0x120] sm:$0xff]
    %v106 = vld [vmem:[#allocation4 + $0x128] sm:$0xff]
    %v107 = vld [vmem:[#allocation4 + $0x130] sm:$0xff]
    %v108 = vld [vmem:[#allocation4 + $0x138] sm:$0xff]
    %v109 = vld [vmem:[#allocation4 + $0x140] sm:$0xff]
    %v110 = vld [vmem:[#allocation4 + $0x148] sm:$0xff]
    %v111 = vld [vmem:[#allocation4 + $0x150] sm:$0xff]
    %v112 = vld [vmem:[#allocation4 + $0x158] sm:$0xff]
    %v113 = vld [vmem:[#allocation4 + $0x160] sm:$0xff]
    %v114 = vld [vmem:[#allocation4 + $0x168] sm:$0xff]
    %v115 = vld [vmem:[#allocation4 + $0x170] sm:$0xff]
    %v116 = vld [vmem:[#allocation4 + $0x178] sm:$0xff]
    %v117 = vld [vmem:[#allocation4 + $0x180] sm:$0xff]
    %v118 = vld [vmem:[#allocation4 + $0x188] sm:$0xff]
    %v119 = vld [vmem:[#allocation4 + $0x190] sm:$0xff]
    %v120 = vld [vmem:[#allocation4 + $0x198] sm:$0xff]
    %v121 = vld [vmem:[#allocation4 + $0x1a0] sm:$0xff]
    %v122 = vld [vmem:[#allocation4 + $0x1a8] sm:$0xff]
    %v123 = vld [vmem:[#allocation4 + $0x1b0] sm:$0xff]
    %v124 = vld [vmem:[#allocation4 + $0x1b8] sm:$0xff]
    %v125 = vld [vmem:[#allocation4 + $0x1c0] sm:$0xff]
    %v126 = vld [vmem:[#allocation4 + $0x1c8] sm:$0xff]
    %v127 = vld [vmem:[#allocation4 + $0x1d0] sm:$0xff]
    %v128 = vld [vmem:[#allocation4 + $0x1d8] sm:$0xff]
    %v129 = vld [vmem:[#allocation4 + $0x1e0] sm:$0xff]
    %v130 = vld [vmem:[#allocation4 + $0x1e8] sm:$0xff]
    %v131 = vld [vmem:[#allocation4 + $0x1f0] sm:$0xff]
    %v132 = vld [vmem:[#allocation4 + $0x1f8] sm:$0xff]
    %v133 = vld [vmem:[#allocation7] sm:$0xff]
    %v134 = vld [vmem:[#allocation7 + $0x8] sm:$0xff]
    %v135 = vld [vmem:[#allocation7 + $0x10] sm:$0xff]
    %v136 = vld [vmem:[#allocation7 + $0x18] sm:$0xff]
    %v137 = vld [vmem:[#allocation7 + $0x20] sm:$0xff]
    %v138 = vld [vmem:[#allocation7 + $0x28] sm:$0xff]
    %v139 = vld [vmem:[#allocation7 + $0x30] sm:$0xff]
    %v140 = vld [vmem:[#allocation7 + $0x38] sm:$0xff]
    %v141 = vld [vmem:[#allocation7 + $0x40] sm:$0xff]
    %v142 = vld [vmem:[#allocation7 + $0x48] sm:$0xff]
    %v143 = vld [vmem:[#allocation7 + $0x50] sm:$0xff]
    %v144 = vld [vmem:[#allocation7 + $0x58] sm:$0xff]
    %v145 = vld [vmem:[#allocation7 + $0x60] sm:$0xff]
    %v146 = vld [vmem:[#allocation7 + $0x68] sm:$0xff]
    %v147 = vld [vmem:[#allocation7 + $0x70] sm:$0xff]
    %v148 = vld [vmem:[#allocation7 + $0x78] sm:$0xff]
    %v149 = vld [vmem:[#allocation7 + $0x80] sm:$0xff]
    %v150 = vld [vmem:[#allocation7 + $0x88] sm:$0xff]
    %v151 = vld [vmem:[#allocation7 + $0x90] sm:$0xff]
    %v152 = vld [vmem:[#allocation7 + $0x98] sm:$0xff]
    %v153 = vld [vmem:[#allocation7 + $0xa0] sm:$0xff]
    %v154 = vld [vmem:[#allocation7 + $0xa8] sm:$0xff]
    %v155 = vld [vmem:[#allocation7 + $0xb0] sm:$0xff]
    %v156 = vld [vmem:[#allocation7 + $0xb8] sm:$0xff]
    %v157 = vld [vmem:[#allocation7 + $0xc0] sm:$0xff]
    %v158 = vld [vmem:[#allocation7 + $0xc8] sm:$0xff]
    %v159 = vld [vmem:[#allocation7 + $0xd0] sm:$0xff]
    %v160 = vld [vmem:[#allocation7 + $0xd8] sm:$0xff]
    %v161 = vld [vmem:[#allocation7 + $0xe0] sm:$0xff]
    %v162 = vld [vmem:[#allocation7 + $0xe8] sm:$0xff]
    %v163 = vld [vmem:[#allocation7 + $0xf0] sm:$0xff]
    %v164 = vld [vmem:[#allocation7 + $0xf8] sm:$0xff]
    %v165 = vld [vmem:[#allocation7 + $0x100] sm:$0xff]
    %v166 = vld [vmem:[#allocation7 + $0x108] sm:$0xff]
    %v167 = vld [vmem:[#allocation7 + $0x110] sm:$0xff]
    %v168 = vld [vmem:[#allocation7 + $0x118] sm:$0xff]
    %v169 = vld [vmem:[#allocation7 + $0x120] sm:$0xff]
    %v170 = vld [vmem:[#allocation7 + $0x128] sm:$0xff]
    %v171 = vld [vmem:[#allocation7 + $0x130] sm:$0xff]
    %v172 = vld [vmem:[#allocation7 + $0x138] sm:$0xff]
    %v173 = vld [vmem:[#allocation7 + $0x140] sm:$0xff]
    %v174 = vld [vmem:[#allocation7 + $0x148] sm:$0xff]
    %v175 = vld [vmem:[#allocation7 + $0x150] sm:$0xff]
    %v176 = vld [vmem:[#allocation7 + $0x158] sm:$0xff]
    %v177 = vld [vmem:[#allocation7 + $0x160] sm:$0xff]
    %v178 = vld [vmem:[#allocation7 + $0x168] sm:$0xff]
    %v179 = vld [vmem:[#allocation7 + $0x170] sm:$0xff]
    %v180 = vld [vmem:[#allocation7 + $0x178] sm:$0xff]
    %v181 = vld [vmem:[#allocation7 + $0x180] sm:$0xff]
    %v182 = vld [vmem:[#allocation7 + $0x188] sm:$0xff]
    %v183 = vld [vmem:[#allocation7 + $0x190] sm:$0xff]
    %v184 = vld [vmem:[#allocation7 + $0x198] sm:$0xff]
    %v185 = vld [vmem:[#allocation7 + $0x1a0] sm:$0xff]
    %v186 = vld [vmem:[#allocation7 + $0x1a8] sm:$0xff]
    %v187 = vld [vmem:[#allocation7 + $0x1b0] sm:$0xff]
    %v188 = vld [vmem:[#allocation7 + $0x1b8] sm:$0xff]
    %v189 = vld [vmem:[#allocation7 + $0x1c0] sm:$0xff]
    %v190 = vld [vmem:[#allocation7 + $0x1c8] sm:$0xff]
    %v191 = vld [vmem:[#allocation7 + $0x1d0] sm:$0xff]
    %v192 = vld [vmem:[#allocation7 + $0x1d8] sm:$0xff]
    %v193 = vld [vmem:[#allocation7 + $0x1e0] sm:$0xff]
    %v194 = vld [vmem:[#allocation7 + $0x1e8] sm:$0xff]
    %v195 = vld [vmem:[#allocation7 + $0x1f0] sm:$0xff]
    %v196 = vld [vmem:[#allocation7 + $0x1f8] sm:$0xff]
    %v197 = vstv %s68
    %v198 = vmul.f32 %v69, %v197
    %v199 = vmul.f32 %v70, %v197
    %v200 = vmul.f32 %v71, %v197
    %v201 = vmul.f32 %v72, %v197
    %v202 = vmul.f32 %v73, %v197
    %v203 = vmul.f32 %v74, %v197
    %v204 = vmul.f32 %v75, %v197
    %v205 = vmul.f32 %v76, %v197
    %v206 = vmul.f32 %v77, %v197
    %v207 = vmul.f32 %v78, %v197
    %v208 = vmul.f32 %v79, %v197
    %v209 = vmul.f32 %v80, %v197
    %v210 = vmul.f32 %v81, %v197
    %v211 = vmul.f32 %v82, %v197
    %v212 = vmul.f32 %v83, %v197
    %v213 = vmul.f32 %v84, %v197
    %v214 = vmul.f32 %v85, %v197
    %v215 = vmul.f32 %v86, %v197
    %v216 = vmul.f32 %v87, %v197
    %v217 = vmul.f32 %v88, %v197
    %v218 = vmul.f32 %v89, %v197
    %v219 = vmul.f32 %v90, %v197
    %v220 = vmul.f32 %v91, %v197
    %v221 = vmul.f32 %v92, %v197
    %v222 = vmul.f32 %v93, %v197
    %v223 = vmul.f32 %v94, %v197
    %v224 = vmul.f32 %v95, %v197
    %v225 = vmul.f32 %v96, %v197
    %v226 = vmul.f32 %v97, %v197
    %v227 = vmul.f32 %v98, %v197
    %v228 = vmul.f32 %v99, %v197
    %v229 = vmul.f32 %v100, %v197
    %v230 = vmul.f32 %v101, %v197
    %v231 = vmul.f32 %v102, %v197
    %v232 = vmul.f32 %v103, %v197
    %v233 = vmul.f32 %v104, %v197
    %v234 = vmul.f32 %v105, %v197
    %v235 = vmul.f32 %v106, %v197
    %v236 = vmul.f32 %v107, %v197
    %v237 = vmul.f32 %v108, %v197
    %v238 = vmul.f32 %v109, %v197
    %v239 = vmul.f32 %v110, %v197
    %v240 = vmul.f32 %v111, %v197
    %v241 = vmul.f32 %v112, %v197
    %v242 = vmul.f32 %v113, %v197
    %v243 = vmul.f32 %v114, %v197
    %v244 = vmul.f32 %v115, %v197
    %v245 = vmul.f32 %v116, %v197
    %v246 = vmul.f32 %v117, %v197
    %v247 = vmul.f32 %v118, %v197
    %v248 = vmul.f32 %v119, %v197
    %v249 = vmul.f32 %v120, %v197
    %v250 = vmul.f32 %v121, %v197
    %v251 = vmul.f32 %v122, %v197
    %v252 = vmul.f32 %v123, %v197
    %v253 = vmul.f32 %v124, %v197
    %v254 = vmul.f32 %v125, %v197
    %v255 = vmul.f32 %v126, %v197
    %v256 = vmul.f32 %v127, %v197
    %v257 = vmul.f32 %v128, %v197
    %v258 = vmul.f32 %v129, %v197
    %v259 = vmul.f32 %v130, %v197
    %v260 = vmul.f32 %v131, %v197
    %v261 = vmul.f32 %v132, %v197
    %v262 = vsub.f32 %v198, %v133
    %v263 = vsub.f32 %v199, %v134
    %v264 = vsub.f32 %v200, %v135
    %v265 = vsub.f32 %v201, %v136
    %v266 = vsub.f32 %v202, %v137
    %v267 = vsub.f32 %v203, %v138
    %v268 = vsub.f32 %v204, %v139
    %v269 = vsub.f32 %v205, %v140
    %v270 = vsub.f32 %v206, %v141
    %v271 = vsub.f32 %v207, %v142
    %v272 = vsub.f32 %v208, %v143
    %v273 = vsub.f32 %v209, %v144
    %v274 = vsub.f32 %v210, %v145
    %v275 = vsub.f32 %v211, %v146
    %v276 = vsub.f32 %v212, %v147
    %v277 = vsub.f32 %v213, %v148
    %v278 = vsub.f32 %v214, %v149
    %v279 = vsub.f32 %v215, %v150
    %v280 = vsub.f32 %v216, %v151
    %v281 = vsub.f32 %v217, %v152
    %v282 = vsub.f32 %v218, %v153
    %v283 = vsub.f32 %v219, %v154
    %v284 = vsub.f32 %v220, %v155
    %v285 = vsub.f32 %v221, %v156
    %v286 = vsub.f32 %v222, %v157
    %v287 = vsub.f32 %v223, %v158
    %v288 = vsub.f32 %v224, %v159
    %v289 = vsub.f32 %v225, %v160
    %v290 = vsub.f32 %v226, %v161
    %v291 = vsub.f32 %v227, %v162
    %v292 = vsub.f32 %v228, %v163
    %v293 = vsub.f32 %v229, %v164
    %v294 = vsub.f32 %v230, %v165
    %v295 = vsub.f32 %v231, %v166
    %v296 = vsub.f32 %v232, %v167
    %v297 = vsub.f32 %v233, %v168
    %v298 = vsub.f32 %v234, %v169
    %v299 = vsub.f32 %v235, %v170
    %v300 = vsub.f32 %v236, %v171
    %v301 = vsub.f32 %v237, %v172
    %v302 = vsub.f32 %v238, %v173
    %v303 = vsub.f32 %v239, %v174
    %v304 = vsub.f32 %v240, %v175
    %v305 = vsub.f32 %v241, %v176
    %v306 = vsub.f32 %v242, %v177
    %v307 = vsub.f32 %v243, %v178
    %v308 = vsub.f32 %v244, %v179
    %v309 = vsub.f32 %v245, %v180
    %v310 = vsub.f32 %v246, %v181
    %v311 = vsub.f32 %v247, %v182
    %v312 = vsub.f32 %v248, %v183
    %v313 = vsub.f32 %v249, %v184
    %v314 = vsub.f32 %v250, %v185
    %v315 = vsub.f32 %v251, %v186
    %v316 = vsub.f32 %v252, %v187
    %v317 = vsub.f32 %v253, %v188
    %v318 = vsub.f32 %v254, %v189
    %v319 = vsub.f32 %v255, %v190
    %v320 = vsub.f32 %v256, %v191
    %v321 = vsub.f32 %v257, %v192
    %v322 = vsub.f32 %v258, %v193
    %v323 = vsub.f32 %v259, %v194
    %v324 = vsub.f32 %v260, %v195
    %v325 = vsub.f32 %v261, %v196
    %v326 = vmul.f32 %v262, %v262
    %v327 = vmul.f32 %v263, %v263
    %v328 = vmul.f32 %v264, %v264
    %v329 = vmul.f32 %v265, %v265
    %v330 = vmul.f32 %v266, %v266
    %v331 = vmul.f32 %v267, %v267
    %v332 = vmul.f32 %v268, %v268
    %v333 = vmul.f32 %v269, %v269
    %v334 = vmul.f32 %v270, %v270
    %v335 = vmul.f32 %v271, %v271
    %v336 = vmul.f32 %v272, %v272
    %v337 = vmul.f32 %v273, %v273
    %v338 = vmul.f32 %v274, %v274
    %v339 = vmul.f32 %v275, %v275
    %v340 = vmul.f32 %v276, %v276
    %v341 = vmul.f32 %v277, %v277
    %v342 = vmul.f32 %v278, %v278
    %v343 = vmul.f32 %v279, %v279
    %v344 = vmul.f32 %v280, %v280
    %v345 = vmul.f32 %v281, %v281
    %v346 = vmul.f32 %v282, %v282
    %v347 = vmul.f32 %v283, %v283
    %v348 = vmul.f32 %v284, %v284
    %v349 = vmul.f32 %v285, %v285
    %v350 = vmul.f32 %v286, %v286
    %v351 = vmul.f32 %v287, %v287
    %v352 = vmul.f32 %v288, %v288
    %v353 = vmul.f32 %v289, %v289
    %v354 = vmul.f32 %v290, %v290
    %v355 = vmul.f32 %v291, %v291
    %v356 = vmul.f32 %v292, %v292
    %v357 = vmul.f32 %v293, %v293
    %v358 = vmul.f32 %v294, %v294
    %v359 = vmul.f32 %v295, %v295
    %v360 = vmul.f32 %v296, %v296
    %v361 = vmul.f32 %v297, %v297
    %v362 = vmul.f32 %v298, %v298
    %v363 = vmul.f32 %v299, %v299
    %v364 = vmul.f32 %v300, %v300
    %v365 = vmul.f32 %v301, %v301
    %v366 = vmul.f32 %v302, %v302
    %v367 = vmul.f32 %v303, %v303
    %v368 = vmul.f32 %v304, %v304
    %v369 = vmul.f32 %v305, %v305
    %v370 = vmul.f32 %v306, %v306
    %v371 = vmul.f32 %v307, %v307
    %v372 = vmul.f32 %v308, %v308
    %v373 = vmul.f32 %v309, %v309
    %v374 = vmul.f32 %v310, %v310
    %v375 = vmul.f32 %v311, %v311
    %v376 = vmul.f32 %v312, %v312
    %v377 = vmul.f32 %v313, %v313
    %v378 = vmul.f32 %v314, %v314
    %v379 = vmul.f32 %v315, %v315
    %v380 = vmul.f32 %v316, %v316
    %v381 = vmul.f32 %v317, %v317
    %v382 = vmul.f32 %v318, %v318
    %v383 = vmul.f32 %v319, %v319
    %v384 = vmul.f32 %v320, %v320
    %v385 = vmul.f32 %v321, %v321
    %v386 = vmul.f32 %v322, %v322
    %v387 = vmul.f32 %v323, %v323
    %v388 = vmul.f32 %v324, %v324
    %v389 = vmul.f32 %v325, %v325
    %v390 = vadd.f32 %v326, 0.0
    %v391 = vadd.f32 %v327, 0.0
    %v392 = vadd.f32 %v328, 0.0
    %v393 = vadd.f32 %v329, 0.0
    %v394 = vadd.f32 %v330, 0.0
    %v395 = vadd.f32 %v331, 0.0
    %v396 = vadd.f32 %v332, 0.0
    %v397 = vadd.f32 %v333, 0.0
    %v398 = vadd.f32 %v390, %v334
    %v399 = vadd.f32 %v391, %v335
    %v400 = vadd.f32 %v392, %v336
    %v401 = vadd.f32 %v393, %v337
    %v402 = vadd.f32 %v394, %v338
    %v403 = vadd.f32 %v395, %v339
    %v404 = vadd.f32 %v396, %v340
    %v405 = vadd.f32 %v397, %v341
    %v406 = vadd.f32 %v398, %v342
    %v407 = vadd.f32 %v399, %v343
    %v408 = vadd.f32 %v400, %v344
    %v409 = vadd.f32 %v401, %v345
    %v410 = vadd.f32 %v402, %v346
    %v411 = vadd.f32 %v403, %v347
    %v412 = vadd.f32 %v404, %v348
    %v413 = vadd.f32 %v405, %v349
    %v414 = vadd.f32 %v406, %v350
    %v415 = vadd.f32 %v407, %v351
    %v416 = vadd.f32 %v408, %v352
    %v417 = vadd.f32 %v409, %v353
    %v418 = vadd.f32 %v410, %v354
    %v419 = vadd.f32 %v411, %v355
    %v420 = vadd.f32 %v412, %v356
    %v421 = vadd.f32 %v413, %v357
    %v422 = vadd.f32 %v414, %v358
    %v423 = vadd.f32 %v415, %v359
    %v424 = vadd.f32 %v416, %v360
    %v425 = vadd.f32 %v417, %v361
    %v426 = vadd.f32 %v418, %v362
    %v427 = vadd.f32 %v419, %v363
    %v428 = vadd.f32 %v420, %v364
    %v429 = vadd.f32 %v421, %v365
    %v430 = vadd.f32 %v422, %v366
    %v431 = vadd.f32 %v423, %v367
    %v432 = vadd.f32 %v424, %v368
    %v433 = vadd.f32 %v425, %v369
    %v434 = vadd.f32 %v426, %v370
    %v435 = vadd.f32 %v427, %v371
    %v436 = vadd.f32 %v428, %v372
    %v437 = vadd.f32 %v429, %v373
    %v438 = vadd.f32 %v430, %v374
    %v439 = vadd.f32 %v431, %v375
    %v440 = vadd.f32 %v432, %v376
    %v441 = vadd.f32 %v433, %v377
    %v442 = vadd.f32 %v434, %v378
    %v443 = vadd.f32 %v435, %v379
    %v444 = vadd.f32 %v436, %v380
    %v445 = vadd.f32 %v437, %v381
    %v446 = vadd.f32 %v438, %v382
    %v447 = vadd.f32 %v439, %v383
    %v448 = vadd.f32 %v440, %v384
    %v449 = vadd.f32 %v441, %v385
    %v450 = vadd.f32 %v442, %v386
    %v451 = vadd.f32 %v443, %v387
    %v452 = vadd.f32 %v444, %v388
    %v453 = vadd.f32 %v445, %v389
    %v454 = vld [vmem:[#allocation4 + $0x200] sm:$0xff]
    %v455 = vld [vmem:[#allocation4 + $0x208] sm:$0xff]
    %v456 = vld [vmem:[#allocation4 + $0x210] sm:$0xff]
    %v457 = vld [vmem:[#allocation4 + $0x218] sm:$0xff]
    %v458 = vld [vmem:[#allocation4 + $0x220] sm:$0xff]
    %v459 = vld [vmem:[#allocation4 + $0x228] sm:$0xff]
    %v460 = vld [vmem:[#allocation4 + $0x230] sm:$0xff]
    %v461 = vld [vmem:[#allocation4 + $0x238] sm:$0xff]
    %v462 = vld [vmem:[#allocation4 + $0x240] sm:$0xff]
    %v463 = vld [vmem:[#allocation4 + $0x248] sm:$0xff]
    %v464 = vld [vmem:[#allocation4 + $0x250] sm:$0xff]
    %v465 = vld [vmem:[#allocation4 + $0x258] sm:$0xff]
    %v466 = vld [vmem:[#allocation4 + $0x260] sm:$0xff]
    %v467 = vld [vmem:[#allocation4 + $0x268] sm:$0xff]
    %v468 = vld [vmem:[#allocation4 + $0x270] sm:$0xff]
    %v469 = vld [vmem:[#allocation4 + $0x278] sm:$0xff]
    %v470 = vld [vmem:[#allocation4 + $0x280] sm:$0xff]
    %v471 = vld [vmem:[#allocation4 + $0x288] sm:$0xff]
    %v472 = vld [vmem:[#allocation4 + $0x290] sm:$0xff]
    %v473 = vld [vmem:[#allocation4 + $0x298] sm:$0xff]
    %v474 = vld [vmem:[#allocation4 + $0x2a0] sm:$0xff]
    %v475 = vld [vmem:[#allocation4 + $0x2a8] sm:$0xff]
    %v476 = vld [vmem:[#allocation4 + $0x2b0] sm:$0xff]
    %v477 = vld [vmem:[#allocation4 + $0x2b8] sm:$0xff]
    %v478 = vld [vmem:[#allocation4 + $0x2c0] sm:$0xff]
    %v479 = vld [vmem:[#allocation4 + $0x2c8] sm:$0xff]
    %v480 = vld [vmem:[#allocation4 + $0x2d0] sm:$0xff]
    %v481 = vld [vmem:[#allocation4 + $0x2d8] sm:$0xff]
    %v482 = vld [vmem:[#allocation4 + $0x2e0] sm:$0xff]
    %v483 = vld [vmem:[#allocation4 + $0x2e8] sm:$0xff]
    %v484 = vld [vmem:[#allocation4 + $0x2f0] sm:$0xff]
    %v485 = vld [vmem:[#allocation4 + $0x2f8] sm:$0xff]
    %v486 = vld [vmem:[#allocation4 + $0x300] sm:$0xff]
    %v487 = vld [vmem:[#allocation4 + $0x308] sm:$0xff]
    %v488 = vld [vmem:[#allocation4 + $0x310] sm:$0xff]
    %v489 = vld [vmem:[#allocation4 + $0x318] sm:$0xff]
    %v490 = vld [vmem:[#allocation4 + $0x320] sm:$0xff]
    %v491 = vld [vmem:[#allocation4 + $0x328] sm:$0xff]
    %v492 = vld [vmem:[#allocation4 + $0x330] sm:$0xff]
    %v493 = vld [vmem:[#allocation4 + $0x338] sm:$0xff]
    %v494 = vld [vmem:[#allocation4 + $0x340] sm:$0xff]
    %v495 = vld [vmem:[#allocation4 + $0x348] sm:$0xff]
    %v496 = vld [vmem:[#allocation4 + $0x350] sm:$0xff]
    %v497 = vld [vmem:[#allocation4 + $0x358] sm:$0xff]
    %v498 = vld [vmem:[#allocation4 + $0x360] sm:$0xff]
    %v499 = vld [vmem:[#allocation4 + $0x368] sm:$0xff]
    %v500 = vld [vmem:[#allocation4 + $0x370] sm:$0xff]
    %v501 = vld [vmem:[#allocation4 + $0x378] sm:$0xff]
    %v502 = vld [vmem:[#allocation4 + $0x380] sm:$0xff]
    %v503 = vld [vmem:[#allocation4 + $0x388] sm:$0xff]
    %v504 = vld [vmem:[#allocation4 + $0x390] sm:$0xff]
    %v505 = vld [vmem:[#allocation4 + $0x398] sm:$0xff]
    %v506 = vld [vmem:[#allocation4 + $0x3a0] sm:$0xff]
    %v507 = vld [vmem:[#allocation4 + $0x3a8] sm:$0xff]
    %v508 = vld [vmem:[#allocation4 + $0x3b0] sm:$0xff]
    %v509 = vld [vmem:[#allocation4 + $0x3b8] sm:$0xff]
    %v510 = vld [vmem:[#allocation4 + $0x3c0] sm:$0xff]
    %v511 = vld [vmem:[#allocation4 + $0x3c8] sm:$0xff]
    %v512 = vld [vmem:[#allocation4 + $0x3d0] sm:$0xff]
    %v513 = vld [vmem:[#allocation4 + $0x3d8] sm:$0xff]
    %v514 = vld [vmem:[#allocation4 + $0x3e0] sm:$0xff]
    %v515 = vld [vmem:[#allocation4 + $0x3e8] sm:$0xff]
    %v516 = vld [vmem:[#allocation4 + $0x3f0] sm:$0xff]
    %v517 = vld [vmem:[#allocation4 + $0x3f8] sm:$0xff]
    %v518 = vld [vmem:[#allocation7 + $0x200] sm:$0xff]
    %v519 = vld [vmem:[#allocation7 + $0x208] sm:$0xff]
    %v520 = vld [vmem:[#allocation7 + $0x210] sm:$0xff]
    %v521 = vld [vmem:[#allocation7 + $0x218] sm:$0xff]
    %v522 = vld [vmem:[#allocation7 + $0x220] sm:$0xff]
    %v523 = vld [vmem:[#allocation7 + $0x228] sm:$0xff]
    %v524 = vld [vmem:[#allocation7 + $0x230] sm:$0xff]
    %v525 = vld [vmem:[#allocation7 + $0x238] sm:$0xff]
    %v526 = vld [vmem:[#allocation7 + $0x240] sm:$0xff]
    %v527 = vld [vmem:[#allocation7 + $0x248] sm:$0xff]
    %v528 = vld [vmem:[#allocation7 + $0x250] sm:$0xff]
    %v529 = vld [vmem:[#allocation7 + $0x258] sm:$0xff]
    %v530 = vld [vmem:[#allocation7 + $0x260] sm:$0xff]
    %v531 = vld [vmem:[#allocation7 + $0x268] sm:$0xff]
    %v532 = vld [vmem:[#allocation7 + $0x270] sm:$0xff]
    %v533 = vld [vmem:[#allocation7 + $0x278] sm:$0xff]
    %v534 = vld [vmem:[#allocation7 + $0x280] sm:$0xff]
    %v535 = vld [vmem:[#allocation7 + $0x288] sm:$0xff]
    %v536 = vld [vmem:[#allocation7 + $0x290] sm:$0xff]
    %v537 = vld [vmem:[#allocation7 + $0x298] sm:$0xff]
    %v538 = vld [vmem:[#allocation7 + $0x2a0] sm:$0xff]
    %v539 = vld [vmem:[#allocation7 + $0x2a8] sm:$0xff]
    %v540 = vld [vmem:[#allocation7 + $0x2b0] sm:$0xff]
    %v541 = vld [vmem:[#allocation7 + $0x2b8] sm:$0xff]
    %v542 = vld [vmem:[#allocation7 + $0x2c0] sm:$0xff]
    %v543 = vld [vmem:[#allocation7 + $0x2c8] sm:$0xff]
    %v544 = vld [vmem:[#allocation7 + $0x2d0] sm:$0xff]
    %v545 = vld [vmem:[#allocation7 + $0x2d8] sm:$0xff]
    %v546 = vld [vmem:[#allocation7 + $0x2e0] sm:$0xff]
    %v547 = vld [vmem:[#allocation7 + $0x2e8] sm:$0xff]
    %v548 = vld [vmem:[#allocation7 + $0x2f0] sm:$0xff]
    %v549 = vld [vmem:[#allocation7 + $0x2f8] sm:$0xff]
    %v550 = vld [vmem:[#allocation7 + $0x300] sm:$0xff]
    %v551 = vld [vmem:[#allocation7 + $0x308] sm:$0xff]
    %v552 = vld [vmem:[#allocation7 + $0x310] sm:$0xff]
    %v553 = vld [vmem:[#allocation7 + $0x318] sm:$0xff]
    %v554 = vld [vmem:[#allocation7 + $0x320] sm:$0xff]
    %v555 = vld [vmem:[#allocation7 + $0x328] sm:$0xff]
    %v556 = vld [vmem:[#allocation7 + $0x330] sm:$0xff]
    %v557 = vld [vmem:[#allocation7 + $0x338] sm:$0xff]
    %v558 = vld [vmem:[#allocation7 + $0x340] sm:$0xff]
    %v559 = vld [vmem:[#allocation7 + $0x348] sm:$0xff]
    %v560 = vld [vmem:[#allocation7 + $0x350] sm:$0xff]
    %v561 = vld [vmem:[#allocation7 + $0x358] sm:$0xff]
    %v562 = vld [vmem:[#allocation7 + $0x360] sm:$0xff]
    %v563 = vld [vmem:[#allocation7 + $0x368] sm:$0xff]
    %v564 = vld [vmem:[#allocation7 + $0x370] sm:$0xff]
    %v565 = vld [vmem:[#allocation7 + $0x378] sm:$0xff]
    %v566 = vld [vmem:[#allocation7 + $0x380] sm:$0xff]
    %v567 = vld [vmem:[#allocation7 + $0x388] sm:$0xff]
    %v568 = vld [vmem:[#allocation7 + $0x390] sm:$0xff]
    %v569 = vld [vmem:[#allocation7 + $0x398] sm:$0xff]
    %v570 = vld [vmem:[#allocation7 + $0x3a0] sm:$0xff]
    %v571 = vld [vmem:[#allocation7 + $0x3a8] sm:$0xff]
    %v572 = vld [vmem:[#allocation7 + $0x3b0] sm:$0xff]
    %v573 = vld [vmem:[#allocation7 + $0x3b8] sm:$0xff]
    %v574 = vld [vmem:[#allocation7 + $0x3c0] sm:$0xff]
    %v575 = vld [vmem:[#allocation7 + $0x3c8] sm:$0xff]
    %v576 = vld [vmem:[#allocation7 + $0x3d0] sm:$0xff]
    %v577 = vld [vmem:[#allocation7 + $0x3d8] sm:$0xff]
    %v578 = vld [vmem:[#allocation7 + $0x3e0] sm:$0xff]
    %v579 = vld [vmem:[#allocation7 + $0x3e8] sm:$0xff]
    %v580 = vld [vmem:[#allocation7 + $0x3f0] sm:$0xff]
    %v581 = vld [vmem:[#allocation7 + $0x3f8] sm:$0xff]
    %v582 = vmul.f32 %v454, %v197
    %v583 = vmul.f32 %v455, %v197
    %v584 = vmul.f32 %v456, %v197
    %v585 = vmul.f32 %v457, %v197
    %v586 = vmul.f32 %v458, %v197
    %v587 = vmul.f32 %v459, %v197
    %v588 = vmul.f32 %v460, %v197
    %v589 = vmul.f32 %v461, %v197
    %v590 = vmul.f32 %v462, %v197
    %v591 = vmul.f32 %v463, %v197
    %v592 = vmul.f32 %v464, %v197
    %v593 = vmul.f32 %v465, %v197
    %v594 = vmul.f32 %v466, %v197
    %v595 = vmul.f32 %v467, %v197
    %v596 = vmul.f32 %v468, %v197
    %v597 = vmul.f32 %v469, %v197
    %v598 = vmul.f32 %v470, %v197
    %v599 = vmul.f32 %v471, %v197
    %v600 = vmul.f32 %v472, %v197
    %v601 = vmul.f32 %v473, %v197
    %v602 = vmul.f32 %v474, %v197
    %v603 = vmul.f32 %v475, %v197
    %v604 = vmul.f32 %v476, %v197
    %v605 = vmul.f32 %v477, %v197
    %v606 = vmul.f32 %v478, %v197
    %v607 = vmul.f32 %v479, %v197
    %v608 = vmul.f32 %v480, %v197
    %v609 = vmul.f32 %v481, %v197
    %v610 = vmul.f32 %v482, %v197
    %v611 = vmul.f32 %v483, %v197
    %v612 = vmul.f32 %v484, %v197
    %v613 = vmul.f32 %v485, %v197
    %v614 = vmul.f32 %v486, %v197
    %v615 = vmul.f32 %v487, %v197
    %v616 = vmul.f32 %v488, %v197
    %v617 = vmul.f32 %v489, %v197
    %v618 = vmul.f32 %v490, %v197
    %v619 = vmul.f32 %v491, %v197
    %v620 = vmul.f32 %v492, %v197
    %v621 = vmul.f32 %v493, %v197
    %v622 = vmul.f32 %v494, %v197
    %v623 = vmul.f32 %v495, %v197
    %v624 = vmul.f32 %v496, %v197
    %v625 = vmul.f32 %v497, %v197
    %v626 = vmul.f32 %v498, %v197
    %v627 = vmul.f32 %v499, %v197
    %v628 = vmul.f32 %v500, %v197
    %v629 = vmul.f32 %v501, %v197
    %v630 = vmul.f32 %v502, %v197
    %v631 = vmul.f32 %v503, %v197
    %v632 = vmul.f32 %v504, %v197
    %v633 = vmul.f32 %v505, %v197
    %v634 = vmul.f32 %v506, %v197
    %v635 = vmul.f32 %v507, %v197
    %v636 = vmul.f32 %v508, %v197
    %v637 = vmul.f32 %v509, %v197
    %v638 = vmul.f32 %v510, %v197
    %v639 = vmul.f32 %v511, %v197
    %v640 = vmul.f32 %v512, %v197
    %v641 = vmul.f32 %v513, %v197
    %v642 = vmul.f32 %v514, %v197
    %v643 = vmul.f32 %v515, %v197
    %v644 = vmul.f32 %v516, %v197
    %v645 = vmul.f32 %v517, %v197
    %v646 = vsub.f32 %v582, %v518
    %v647 = vsub.f32 %v583, %v519
    %v648 = vsub.f32 %v584, %v520
    %v649 = vsub.f32 %v585, %v521
    %v650 = vsub.f32 %v586, %v522
    %v651 = vsub.f32 %v587, %v523
    %v652 = vsub.f32 %v588, %v524
    %v653 = vsub.f32 %v589, %v525
    %v654 = vsub.f32 %v590, %v526
    %v655 = vsub.f32 %v591, %v527
    %v656 = vsub.f32 %v592, %v528
    %v657 = vsub.f32 %v593, %v529
    %v658 = vsub.f32 %v594, %v530
    %v659 = vsub.f32 %v595, %v531
    %v660 = vsub.f32 %v596, %v532
    %v661 = vsub.f32 %v597, %v533
    %v662 = vsub.f32 %v598, %v534
    %v663 = vsub.f32 %v599, %v535
    %v664 = vsub.f32 %v600, %v536
    %v665 = vsub.f32 %v601, %v537
    %v666 = vsub.f32 %v602, %v538
    %v667 = vsub.f32 %v603, %v539
    %v668 = vsub.f32 %v604, %v540
    %v669 = vsub.f32 %v605, %v541
    %v670 = vsub.f32 %v606, %v542
    %v671 = vsub.f32 %v607, %v543
    %v672 = vsub.f32 %v608, %v544
    %v673 = vsub.f32 %v609, %v545
    %v674 = vsub.f32 %v610, %v546
    %v675 = vsub.f32 %v611, %v547
    %v676 = vsub.f32 %v612, %v548
    %v677 = vsub.f32 %v613, %v549
    %v678 = vsub.f32 %v614, %v550
    %v679 = vsub.f32 %v615, %v551
    %v680 = vsub.f32 %v616, %v552
    %v681 = vsub.f32 %v617, %v553
    %v682 = vsub.f32 %v618, %v554
    %v683 = vsub.f32 %v619, %v555
    %v684 = vsub.f32 %v620, %v556
    %v685 = vsub.f32 %v621, %v557
    %v686 = vsub.f32 %v622, %v558
    %v687 = vsub.f32 %v623, %v559
    %v688 = vsub.f32 %v624, %v560
    %v689 = vsub.f32 %v625, %v561
    %v690 = vsub.f32 %v626, %v562
    %v691 = vsub.f32 %v627, %v563
    %v692 = vsub.f32 %v628, %v564
    %v693 = vsub.f32 %v629, %v565
    %v694 = vsub.f32 %v630, %v566
    %v695 = vsub.f32 %v631, %v567
    %v696 = vsub.f32 %v632, %v568
    %v697 = vsub.f32 %v633, %v569
    %v698 = vsub.f32 %v634, %v570
    %v699 = vsub.f32 %v635, %v571
    %v700 = vsub.f32 %v636, %v572
    %v701 = vsub.f32 %v637, %v573
    %v702 = vsub.f32 %v638, %v574
    %v703 = vsub.f32 %v639, %v575
    %v704 = vsub.f32 %v640, %v576
    %v705 = vsub.f32 %v641, %v577
    %v706 = vsub.f32 %v642, %v578
    %v707 = vsub.f32 %v643, %v579
    %v708 = vsub.f32 %v644, %v580
    %v709 = vsub.f32 %v645, %v581
    %v710 = vmul.f32 %v646, %v646
    %v711 = vmul.f32 %v647, %v647
    %v712 = vmul.f32 %v648, %v648
    %v713 = vmul.f32 %v649, %v649
    %v714 = vmul.f32 %v650, %v650
    %v715 = vmul.f32 %v651, %v651
    %v716 = vmul.f32 %v652, %v652
    %v717 = vmul.f32 %v653, %v653
    %v718 = vmul.f32 %v654, %v654
    %v719 = vmul.f32 %v655, %v655
    %v720 = vmul.f32 %v656, %v656
    %v721 = vmul.f32 %v657, %v657
    %v722 = vmul.f32 %v658, %v658
    %v723 = vmul.f32 %v659, %v659
    %v724 = vmul.f32 %v660, %v660
    %v725 = vmul.f32 %v661, %v661
    %v726 = vmul.f32 %v662, %v662
    %v727 = vmul.f32 %v663, %v663
    %v728 = vmul.f32 %v664, %v664
    %v729 = vmul.f32 %v665, %v665
    %v730 = vmul.f32 %v666, %v666
    %v731 = vmul.f32 %v667, %v667
    %v732 = vmul.f32 %v668, %v668
    %v733 = vmul.f32 %v669, %v669
    %v734 = vmul.f32 %v670, %v670
    %v735 = vmul.f32 %v671, %v671
    %v736 = vmul.f32 %v672, %v672
    %v737 = vmul.f32 %v673, %v673
    %v738 = vmul.f32 %v674, %v674
    %v739 = vmul.f32 %v675, %v675
    %v740 = vmul.f32 %v676, %v676
    %v741 = vmul.f32 %v677, %v677
    %v742 = vmul.f32 %v678, %v678
    %v743 = vmul.f32 %v679, %v679
    %v744 = vmul.f32 %v680, %v680
    %v745 = vmul.f32 %v681, %v681
    %v746 = vmul.f32 %v682, %v682
    %v747 = vmul.f32 %v683, %v683
    %v748 = vmul.f32 %v684, %v684
    %v749 = vmul.f32 %v685, %v685
    %v750 = vmul.f32 %v686, %v686
    %v751 = vmul.f32 %v687, %v687
    %v752 = vmul.f32 %v688, %v688
    %v753 = vmul.f32 %v689, %v689
    %v754 = vmul.f32 %v690, %v690
    %v755 = vmul.f32 %v691, %v691
    %v756 = vmul.f32 %v692, %v692
    %v757 = vmul.f32 %v693, %v693
    %v758 = vmul.f32 %v694, %v694
    %v759 = vmul.f32 %v695, %v695
    %v760 = vmul.f32 %v696, %v696
    %v761 = vmul.f32 %v697, %v697
    %v762 = vmul.f32 %v698, %v698
    %v763 = vmul.f32 %v699, %v699
    %v764 = vmul.f32 %v700, %v700
    %v765 = vmul.f32 %v701, %v701
    %v766 = vmul.f32 %v702, %v702
    %v767 = vmul.f32 %v703, %v703
    %v768 = vmul.f32 %v704, %v704
    %v769 = vmul.f32 %v705, %v705
    %v770 = vmul.f32 %v706, %v706
    %v771 = vmul.f32 %v707, %v707
    %v772 = vmul.f32 %v708, %v708
    %v773 = vmul.f32 %v709, %v709
    %v774 = vadd.f32 %v446, %v710
    %v775 = vadd.f32 %v447, %v711
    %v776 = vadd.f32 %v448, %v712
    %v777 = vadd.f32 %v449, %v713
    %v778 = vadd.f32 %v450, %v714
    %v779 = vadd.f32 %v451, %v715
    %v780 = vadd.f32 %v452, %v716
    %v781 = vadd.f32 %v453, %v717
    %v782 = vadd.f32 %v774, %v718
    %v783 = vadd.f32 %v775, %v719
    %v784 = vadd.f32 %v776, %v720
    %v785 = vadd.f32 %v777, %v721
    %v786 = vadd.f32 %v778, %v722
    %v787 = vadd.f32 %v779, %v723
    %v788 = vadd.f32 %v780, %v724
    %v789 = vadd.f32 %v781, %v725
    %v790 = vadd.f32 %v782, %v726
    %v791 = vadd.f32 %v783, %v727
    %v792 = vadd.f32 %v784, %v728
    %v793 = vadd.f32 %v785, %v729
    %v794 = vadd.f32 %v786, %v730
    %v795 = vadd.f32 %v787, %v731
    %v796 = vadd.f32 %v788, %v732
    %v797 = vadd.f32 %v789, %v733
    %v798 = vadd.f32 %v790, %v734
    %v799 = vadd.f32 %v791, %v735
    %v800 = vadd.f32 %v792, %v736
    %v801 = vadd.f32 %v793, %v737
    %v802 = vadd.f32 %v794, %v738
    %v803 = vadd.f32 %v795, %v739
    %v804 = vadd.f32 %v796, %v740
    %v805 = vadd.f32 %v797, %v741
    %v806 = vadd.f32 %v798, %v742
    %v807 = vadd.f32 %v799, %v743
    %v808 = vadd.f32 %v800, %v744
    %v809 = vadd.f32 %v801, %v745
    %v810 = vadd.f32 %v802, %v746
    %v811 = vadd.f32 %v803, %v747
    %v812 = vadd.f32 %v804, %v748
    %v813 = vadd.f32 %v805, %v749
    %v814 = vadd.f32 %v806, %v750
    %v815 = vadd.f32 %v807, %v751
    %v816 = vadd.f32 %v808, %v752
    %v817 = vadd.f32 %v809, %v753
    %v818 = vadd.f32 %v810, %v754
    %v819 = vadd.f32 %v811, %v755
    %v820 = vadd.f32 %v812, %v756
    %v821 = vadd.f32 %v813, %v757
    %v822 = vadd.f32 %v814, %v758
    %v823 = vadd.f32 %v815, %v759
    %v824 = vadd.f32 %v816, %v760
    %v825 = vadd.f32 %v817, %v761
    %v826 = vadd.f32 %v818, %v762
    %v827 = vadd.f32 %v819, %v763
    %v828 = vadd.f32 %v820, %v764
    %v829 = vadd.f32 %v821, %v765
    %v830 = vadd.f32 %v822, %v766
    %v831 = vadd.f32 %v823, %v767
    %v832 = vadd.f32 %v824, %v768
    %v833 = vadd.f32 %v825, %v769
    %v834 = vadd.f32 %v826, %v770
    %v835 = vadd.f32 %v827, %v771
    %v836 = vadd.f32 %v828, %v772
    %v837 = vadd.f32 %v829, %v773
    %v838 = vld [vmem:[#allocation9] sm:$0xff]
    %v839 = vld [vmem:[#allocation9 + $0x8] sm:$0xff]
    %v840 = vld [vmem:[#allocation9 + $0x10] sm:$0xff]
    %v841 = vld [vmem:[#allocation9 + $0x18] sm:$0xff]
    %v842 = vld [vmem:[#allocation9 + $0x20] sm:$0xff]
    %v843 = vld [vmem:[#allocation9 + $0x28] sm:$0xff]
    %v844 = vld [vmem:[#allocation9 + $0x30] sm:$0xff]
    %v845 = vld [vmem:[#allocation9 + $0x38] sm:$0xff]
    %v846 = vadd.f32 %v838, %v830
    %v847 = vadd.f32 %v839, %v831
    %v848 = vadd.f32 %v840, %v832
    %v849 = vadd.f32 %v841, %v833
    %v850 = vadd.f32 %v842, %v834
    %v851 = vadd.f32 %v843, %v835
    %v852 = vadd.f32 %v844, %v836
    %v853 = vadd.f32 %v845, %v837
    %854 = vst [vmem:[#allocation9] sm:$0xff] %v846
    %855 = vst [vmem:[#allocation9 + $0x8] sm:$0xff] %v847
    %856 = vst [vmem:[#allocation9 + $0x10] sm:$0xff] %v848
    %857 = vst [vmem:[#allocation9 + $0x18] sm:$0xff] %v849
    %858 = vst [vmem:[#allocation9 + $0x20] sm:$0xff] %v850
    %859 = vst [vmem:[#allocation9 + $0x28] sm:$0xff] %v851
    %860 = vst [vmem:[#allocation9 + $0x30] sm:$0xff] %v852
    %861 = vst [vmem:[#allocation9 + $0x38] sm:$0xff] %v853
    // Predicated region
    $region22: #{tpu_custom_call.1} parent=1 // pred_check
      _
    $region23: #{tpu_custom_call.1} parent=1 // pred_check_branch
      %863 = sbr.rel (0) target = $region25
    $region24: #{tpu_custom_call.1} parent=1 // pred_region
      %s865 = ssub.s32 1024, 1024
      %866 = vsyncadd [#allocation6], %s865
      %s868 = sshll.u32 [#allocation9], 4
      %s869 = int_to_ptr.vmem [resolvable:$true] %s868
      %871 = dma.vmem_to_hbm [thread:$0]  %s869, 1024, %s3, [#allocation6]
    $region25: #{tpu_custom_call.1} parent=1 // pred_fallthru
      _
    // Predicated region
    $region26: #{tpu_custom_call.1} parent=1 // pred_check
      _
    $region27: #{tpu_custom_call.1} parent=1 // pred_check_branch
      %873 = sbr.rel (0) target = $region29
    $region28: #{tpu_custom_call.1} parent=1 // pred_region
      %874 = dma.done [#allocation6], 1024
    $region29: #{tpu_custom_call.1} parent=1 // pred_fallthru
      _
    %875 = vsyncpa [#allocation5], 1
    %876 = vsyncpa [#allocation8], 1
    %877 = vsyncpa [#allocation6], 1

</llo_original>
